<compile_context>
chip_gen: v7x
topology: tpu7x:2x2x1
jax: 0.10.0
libtpu: 0.0.40
codegen_flags: <defaults>
</compile_context>

<pallas_src>
import jax
import jax.numpy as jnp
from jax import lax
from jax.experimental import pallas as pl
from jax.experimental.pallas import tpu as pltpu

EPS = 1e-5  # PyTorch BatchNorm2d default eps


def basic_block_kernel(x_ref,       # (n_blk, H+2, (W+2)*Cin)  f32 padded, row-flattened input
                       w1_ref,      # (3, (W+2)*Cin, W*Cout)   bf16 banded conv1 weights (bn1 scale folded)
                       w2_ref,      # (3, W*Cout,   W*Cout)    bf16 banded conv2 weights (bn2 scale folded)
                       wsc_ref,     # ((W+2)*Cin, W*Cout)      bf16 banded 1x1 shortcut (bn_sc scale folded)
                       shift_ref,   # (2, W*Cout)              f32 [bn1 shift | bn2+bn_sc shift], tiled over W
                       out_ref,     # (n_blk, H, W*Cout)       f32 output, lane-dense
                       s1_ref):     # VMEM scratch (H+2, W*Cout) f32 conv1 intermediate with H-halo rows
    n_blk, H, LANE = out_ref.shape

    # Zero only the two halo rows (the H zero-padding for conv2).  Done every
    # grid step (2 x LANE, negligible) instead of a program_id==0 guard so the
    # kernel is correct when the batch axis is sharded across TensorCores.
    zrow = jnp.zeros((1, LANE), s1_ref.dtype)
    s1_ref[0:1, :] = zrow
    s1_ref[H + 1:H + 2, :] = zrow

    sh1 = shift_ref[0:1, :]          # folded bn1 shift (tiled over W)
    sh2 = shift_ref[1:2, :]          # folded bn2 + bn_sc shift (tiled over W)

    for b in range(n_blk):           # small static loop over images in the batch block
        # ---- conv1 (3x3, pad 1) + bn1 + relu: 3 banded matmuls, lane-dense result ----
        acc1 = jnp.dot(x_ref[b, 0:H, :].astype(jnp.bfloat16), w1_ref[0],
                       preferred_element_type=jnp.float32)
        for kh in (1, 2):
            acc1 = acc1 + jnp.dot(x_ref[b, kh:kh + H, :].astype(jnp.bfloat16),
                                  w1_ref[kh], preferred_element_type=jnp.float32)
        s1_ref[1:H + 1, :] = jnp.maximum(acc1 + sh1, 0.0)       # bn1 shift + relu (f32, VPU)

        # ---- conv2 (3x3, pad 1) + bn2, with the 1x1 projection shortcut fused ----
        acc2 = jnp.dot(x_ref[b, 1:H + 1, :].astype(jnp.bfloat16), wsc_ref[...],
                       preferred_element_type=jnp.float32)       # shortcut seeds the accumulator
        for kh in range(3):
            acc2 = acc2 + jnp.dot(s1_ref[kh:kh + H, :].astype(jnp.bfloat16),
                                  w2_ref[kh], preferred_element_type=jnp.float32)

        out_ref[b, :, :] = jnp.maximum(acc2 + sh2, 0.0)          # (H, W*Cout) unmasked store


def _fold_bn(gamma, beta, mean, var):
    scale = gamma / jnp.sqrt(var + EPS)
    return scale, beta - mean * scale


def _pick_n_blk(n):
    # Prefer >= 2 grid steps (so "parallel" can use both v7x TensorCores) while
    # amortizing the ~0.35us per-grid-step overhead for larger batches.
    for cand in (8, 4, 2):
        if n % cand == 0 and n // cand >= 2:
            return cand
    return 1 if n >= 2 else n


def basic_block(x_nhwc, params):
    """x_nhwc: (N, H, W, Cin) float32.  Returns (N, H, W, Cout) float32."""
    N, H, W, Cin = x_nhwc.shape
    Cout = params["w1"].shape[-1]
    LANE = W * Cout                 # lane-dense trailing dim (128 for W=16, Cout=8)
    ROWW = (W + 2) * Cin            # flattened, W-padded input row width

    n_blk = _pick_n_blk(N)
    grid = (N // n_blk,)

    # Fold BN (inference mode) into per-channel scale/shift; fold scales into weights.
    s1, sh1 = _fold_bn(params["g1"], params["b1"], params["m1"], params["v1"])
    s2, sh2 = _fold_bn(params["g2"], params["b2"], params["m2"], params["v2"])
    ssc, shsc = _fold_bn(params["gs"], params["bs"], params["ms"], params["vs"])

    w1s = params["w1"].astype(jnp.float32) * s1      # (3,3,Cin,Cout) HWIO, bn1-scaled
    w2s = params["w2"].astype(jnp.float32) * s2      # (3,3,Cout,Cout)
    wscs = params["wsc"].astype(jnp.float32) * ssc   # (Cin,Cout)

    # Banded (im2row-folded) weights: a 3x3 conv with pad 1 becomes
    #   out[h, w*Cout+co] = sum_kh  x_row[h+kh, :] @ band[kh][:, w*Cout+co]
    # so the kernel only does full-lane-width matmuls and lane-dense stores.
    P1 = jnp.stack([jnp.eye(W + 2, W, -kw, dtype=jnp.float32) for kw in range(3)])
    P2 = jnp.stack([jnp.eye(W, W, 1 - kw, dtype=jnp.float32) for kw in range(3)])
    Psc = jnp.eye(W + 2, W, -1, dtype=jnp.float32)

    w1_b = jnp.einsum("kiw,hkcd->hicwd", P1, w1s).reshape(3, ROWW, LANE).astype(jnp.bfloat16)
    w2_b = jnp.einsum("kiw,hkcd->hicwd", P2, w2s).reshape(3, LANE, LANE).astype(jnp.bfloat16)
    wsc_b = jnp.einsum("iw,cd->icwd", Psc, wscs).reshape(ROWW, LANE).astype(jnp.bfloat16)

    shifts = jnp.stack([jnp.tile(sh1, W), jnp.tile(sh2 + shsc, W)]).astype(jnp.float32)

    # Spatial zero-pad + flatten each row to (W+2)*Cin (contiguous reshape).
    x_flat = jnp.pad(x_nhwc, ((0, 0), (1, 1), (1, 1), (0, 0))
                     ).reshape(N, H + 2, ROWW).astype(jnp.float32)

    flops = 2 * N * H * W * (9 * Cin * Cout + 9 * Cout * Cout + Cin * Cout)
    bytes_accessed = (x_flat.size * 4
                      + (w1_b.size + w2_b.size + wsc_b.size) * 2
                      + shifts.size * 4
                      + N * H * LANE * 4)

    out_flat = pl.pallas_call(
        basic_block_kernel,
        out_shape=jax.ShapeDtypeStruct((N, H, LANE), jnp.float32),
        grid_spec=pltpu.PrefetchScalarGridSpec(
            num_scalar_prefetch=0,
            grid=grid,
            in_specs=[
                pl.BlockSpec((n_blk, H + 2, ROWW), lambda i: (i, 0, 0)),
                pl.BlockSpec((3, ROWW, LANE), lambda i: (0, 0, 0)),
                pl.BlockSpec((3, LANE, LANE), lambda i: (0, 0, 0)),
                pl.BlockSpec((ROWW, LANE), lambda i: (0, 0)),
                pl.BlockSpec((2, LANE), lambda i: (0, 0)),
            ],
            out_specs=pl.BlockSpec((n_blk, H, LANE), lambda i: (i, 0, 0)),
            scratch_shapes=[pltpu.VMEM((H + 2, LANE), jnp.float32)],
        ),
        compiler_params=pltpu.CompilerParams(
            dimension_semantics=("parallel",)),
        cost_estimate=pl.CostEstimate(flops=flops, transcendentals=0,
                                      bytes_accessed=bytes_accessed),
    )(x_flat, w1_b, w2_b, wsc_b, shifts)

    # (N, H, W*Cout) -> (N, H, W, Cout): free, contiguous reshape.
    return out_flat.reshape(N, H, W, Cout)


# ------------------------- pure-JAX reference (for checking) -------------------------
def basic_block_ref(x_nhwc, params):
    def conv3x3(x, w):
        return lax.conv_general_dilated(
            x, w, (1, 1), ((1, 1), (1, 1)),
            dimension_numbers=("NHWC", "HWIO", "NHWC"))

    def bn(y, g, b, m, v):
        s, sh = _fold_bn(g, b, m, v)
        return y * s + sh

    o = conv3x3(x_nhwc, params["w1"])
    o = jax.nn.relu(bn(o, params["g1"], params["b1"], params["m1"], params["v1"]))
    o = conv3x3(o, params["w2"])
    o = bn(o, params["g2"], params["b2"], params["m2"], params["v2"])
    s = lax.conv_general_dilated(
        x_nhwc, params["wsc"][None, None], (1, 1), ((0, 0), (0, 0)),
        dimension_numbers=("NHWC", "HWIO", "NHWC"))
    s = bn(s, params["gs"], params["bs"], params["ms"], params["vs"])
    return jax.nn.relu(o + s)


if __name__ == "__main__":
    N, Cin, Cout, H, W = 2, 4, 8, 16, 16

    key = jax.random.PRNGKey(0)
    ks = jax.random.split(key, 16)

    # Input in PyTorch NCHW layout, transposed to the kernel's NHWC layout.
    x_nchw = jax.random.normal(ks[0], (N, Cin, H, W), jnp.float32)
    x_nhwc = jnp.transpose(x_nchw, (0, 2, 3, 1))

    params = {
        "w1": 0.2 * jax.random.normal(ks[1], (3, 3, Cin, Cout), jnp.float32),
        "w2": 0.2 * jax.random.normal(ks[2], (3, 3, Cout, Cout), jnp.float32),
        "wsc": 0.2 * jax.random.normal(ks[3], (Cin, Cout), jnp.float32),
        "g1": 1.0 + 0.1 * jax.random.normal(ks[4], (Cout,), jnp.float32),
        "b1": 0.1 * jax.random.normal(ks[5], (Cout,), jnp.float32),
        "m1": 0.1 * jax.random.normal(ks[6], (Cout,), jnp.float32),
        "v1": 0.5 + jax.random.uniform(ks[7], (Cout,), jnp.float32),
        "g2": 1.0 + 0.1 * jax.random.normal(ks[8], (Cout,), jnp.float32),
        "b2": 0.1 * jax.random.normal(ks[9], (Cout,), jnp.float32),
        "m2": 0.1 * jax.random.normal(ks[10], (Cout,), jnp.float32),
        "v2": 0.5 + jax.random.uniform(ks[11], (Cout,), jnp.float32),
        "gs": 1.0 + 0.1 * jax.random.normal(ks[12], (Cout,), jnp.float32),
        "bs": 0.1 * jax.random.normal(ks[13], (Cout,), jnp.float32),
        "ms": 0.1 * jax.random.normal(ks[14], (Cout,), jnp.float32),
        "vs": 0.5 + jax.random.uniform(ks[15], (Cout,), jnp.float32),
    }

    out = jax.block_until_ready(basic_block(x_nhwc, params))
    assert out.shape == (N, H, W, Cout), out.shape

    ref = basic_block_ref(x_nhwc, params)
    max_err = float(jnp.max(jnp.abs(out - ref)))
    # bf16 MXU operands (f32 accumulate) -> widened tolerance vs the f32 reference.
    if not bool(jnp.allclose(out, ref, atol=1e-1, rtol=5e-2)):
        raise AssertionError(f"Pallas kernel mismatch vs reference, max abs err={max_err}")

    # (If NCHW output is needed downstream: jnp.transpose(out, (0, 3, 1, 2)).)
    print("KERNEL_OK")
</pallas_src>

<mosaic_0001>
module attributes {stable_mosaic.version = 11 : i64} {
  func.func @basic_block_kernel(%arg0: i32, %arg1: memref<1x18x72xf32, #tpu.memory_space<vmem>>, %arg2: memref<3x72x128xbf16, #tpu.memory_space<vmem>>, %arg3: memref<3x128x128xbf16, #tpu.memory_space<vmem>>, %arg4: memref<72x128xbf16, #tpu.memory_space<vmem>>, %arg5: memref<2x128xf32, #tpu.memory_space<vmem>>, %arg6: memref<1x16x128xf32, #tpu.memory_space<vmem>>, %arg7: memref<18x128xf32, #tpu.memory_space<vmem>>) attributes {dimension_semantics = [#tpu.dimension_semantics<parallel>], iteration_bounds = array<i64: 2>, scalar_prefetch = 0 : i64, scratch_operands = 1 : i64, tpu.core_type = #tpu.core_type<tc>, window_params = [{transform_indices = @transform_0, window_bounds = array<i64: 1, 18, 72>}, {pipeline_mode = #tpu.pipeline_mode<synchronous>, transform_indices = @transform_1, window_bounds = array<i64: 3, 72, 128>}, {pipeline_mode = #tpu.pipeline_mode<synchronous>, transform_indices = @transform_2, window_bounds = array<i64: 3, 128, 128>}, {pipeline_mode = #tpu.pipeline_mode<synchronous>, transform_indices = @transform_3, window_bounds = array<i64: 72, 128>}, {pipeline_mode = #tpu.pipeline_mode<synchronous>, transform_indices = @transform_4, window_bounds = array<i64: 2, 128>}, {transform_indices = @transform_5, window_bounds = array<i64: 1, 16, 128>}]} {
    %cst = arith.constant 0.000000e+00 : f32
    %0 = vector.broadcast %cst : f32 to vector<1x128xf32>
    %c0 = arith.constant 0 : index
    %c0_0 = arith.constant 0 : index
    %1 = vector.load %arg7[%c0, %c0_0] : memref<18x128xf32, #tpu.memory_space<vmem>>, vector<1x128xf32>
    tpu.vector_store %arg7[%c0, %c0_0], %0 {strides = array<i32>} : memref<18x128xf32, #tpu.memory_space<vmem>>, vector<1x128xf32>,
    %c17 = arith.constant 17 : index
    %c0_1 = arith.constant 0 : index
    %2 = vector.load %arg7[%c17, %c0_1] : memref<18x128xf32, #tpu.memory_space<vmem>>, vector<1x128xf32>
    tpu.vector_store %arg7[%c17, %c0_1], %0 {strides = array<i32>} : memref<18x128xf32, #tpu.memory_space<vmem>>, vector<1x128xf32>,
    %c0_2 = arith.constant 0 : index
    %c0_3 = arith.constant 0 : index
    %3 = vector.load %arg5[%c0_2, %c0_3] : memref<2x128xf32, #tpu.memory_space<vmem>>, vector<1x128xf32>
    %c1 = arith.constant 1 : index
    %c0_4 = arith.constant 0 : index
    %4 = vector.load %arg5[%c1, %c0_4] : memref<2x128xf32, #tpu.memory_space<vmem>>, vector<1x128xf32>
    %c0_5 = arith.constant 0 : index
    %c0_6 = arith.constant 0 : index
    %c0_7 = arith.constant 0 : index
    %5 = vector.load %arg1[%c0_5, %c0_6, %c0_7] : memref<1x18x72xf32, #tpu.memory_space<vmem>>, vector<1x16x72xf32>
    %6 = vector.shape_cast %5 : vector<1x16x72xf32> to vector<16x72xf32>
    %7 = arith.truncf %6 : vector<16x72xf32> to vector<16x72xbf16>
    %c0_8 = arith.constant 0 : index
    %c0_9 = arith.constant 0 : index
    %c0_10 = arith.constant 0 : index
    %8 = vector.load %arg2[%c0_8, %c0_9, %c0_10] : memref<3x72x128xbf16, #tpu.memory_space<vmem>>, vector<1x72x128xbf16>
    %9 = vector.shape_cast %8 : vector<1x72x128xbf16> to vector<72x128xbf16>
    %cst_11 = arith.constant dense<0.000000e+00> : vector<16x128xf32>
    %10 = tpu.matmul %7, %9, %cst_11 {dimension_numbers = #tpu.dot_dimension_numbers<[1], [0], [0], [1], [0, 0, 1, 1], [], []>} : vector<16x72xbf16>, vector<72x128xbf16>, vector<16x128xf32> -> vector<16x128xf32>
    %c0_12 = arith.constant 0 : index
    %c1_13 = arith.constant 1 : index
    %c0_14 = arith.constant 0 : index
    %11 = vector.load %arg1[%c0_12, %c1_13, %c0_14] : memref<1x18x72xf32, #tpu.memory_space<vmem>>, vector<1x16x72xf32>
    %12 = vector.shape_cast %11 : vector<1x16x72xf32> to vector<16x72xf32>
    %13 = arith.truncf %12 : vector<16x72xf32> to vector<16x72xbf16>
    %c1_15 = arith.constant 1 : index
    %c0_16 = arith.constant 0 : index
    %c0_17 = arith.constant 0 : index
    %14 = vector.load %arg2[%c1_15, %c0_16, %c0_17] : memref<3x72x128xbf16, #tpu.memory_space<vmem>>, vector<1x72x128xbf16>
    %15 = vector.shape_cast %14 : vector<1x72x128xbf16> to vector<72x128xbf16>
    %cst_18 = arith.constant dense<0.000000e+00> : vector<16x128xf32>
    %16 = tpu.matmul %13, %15, %cst_18 {dimension_numbers = #tpu.dot_dimension_numbers<[1], [0], [0], [1], [0, 0, 1, 1], [], []>} : vector<16x72xbf16>, vector<72x128xbf16>, vector<16x128xf32> -> vector<16x128xf32>
    %17 = arith.addf %10, %16 : vector<16x128xf32>
    %c0_19 = arith.constant 0 : index
    %c2 = arith.constant 2 : index
    %c0_20 = arith.constant 0 : index
    %18 = vector.load %arg1[%c0_19, %c2, %c0_20] : memref<1x18x72xf32, #tpu.memory_space<vmem>>, vector<1x16x72xf32>
    %19 = vector.shape_cast %18 : vector<1x16x72xf32> to vector<16x72xf32>
    %20 = arith.truncf %19 : vector<16x72xf32> to vector<16x72xbf16>
    %c2_21 = arith.constant 2 : index
    %c0_22 = arith.constant 0 : index
    %c0_23 = arith.constant 0 : index
    %21 = vector.load %arg2[%c2_21, %c0_22, %c0_23] : memref<3x72x128xbf16, #tpu.memory_space<vmem>>, vector<1x72x128xbf16>
    %22 = vector.shape_cast %21 : vector<1x72x128xbf16> to vector<72x128xbf16>
    %cst_24 = arith.constant dense<0.000000e+00> : vector<16x128xf32>
    %23 = tpu.matmul %20, %22, %cst_24 {dimension_numbers = #tpu.dot_dimension_numbers<[1], [0], [0], [1], [0, 0, 1, 1], [], []>} : vector<16x72xbf16>, vector<72x128xbf16>, vector<16x128xf32> -> vector<16x128xf32>
    %24 = arith.addf %17, %23 : vector<16x128xf32>
    %25 = vector.broadcast %3 : vector<1x128xf32> to vector<16x128xf32>
    %26 = arith.addf %24, %25 : vector<16x128xf32>
    %cst_25 = arith.constant 0.000000e+00 : f32
    %27 = vector.broadcast %cst_25 : f32 to vector<16x128xf32>
    %28 = arith.maximumf %26, %27 : vector<16x128xf32>
    %c1_26 = arith.constant 1 : index
    %c0_27 = arith.constant 0 : index
    %29 = vector.load %arg7[%c1_26, %c0_27] : memref<18x128xf32, #tpu.memory_space<vmem>>, vector<16x128xf32>
    tpu.vector_store %arg7[%c1_26, %c0_27], %28 {strides = array<i32>} : memref<18x128xf32, #tpu.memory_space<vmem>>, vector<16x128xf32>,
    %c0_28 = arith.constant 0 : index
    %c1_29 = arith.constant 1 : index
    %c0_30 = arith.constant 0 : index
    %30 = vector.load %arg1[%c0_28, %c1_29, %c0_30] : memref<1x18x72xf32, #tpu.memory_space<vmem>>, vector<1x16x72xf32>
    %31 = vector.shape_cast %30 : vector<1x16x72xf32> to vector<16x72xf32>
    %32 = arith.truncf %31 : vector<16x72xf32> to vector<16x72xbf16>
    %c0_31 = arith.constant 0 : index
    %c0_32 = arith.constant 0 : index
    %33 = vector.load %arg4[%c0_31, %c0_32] : memref<72x128xbf16, #tpu.memory_space<vmem>>, vector<72x128xbf16>
    %cst_33 = arith.constant dense<0.000000e+00> : vector<16x128xf32>
    %34 = tpu.matmul %32, %33, %cst_33 {dimension_numbers = #tpu.dot_dimension_numbers<[1], [0], [0], [1], [0, 0, 1, 1], [], []>} : vector<16x72xbf16>, vector<72x128xbf16>, vector<16x128xf32> -> vector<16x128xf32>
    %c0_34 = arith.constant 0 : index
    %c0_35 = arith.constant 0 : index
    %35 = vector.load %arg7[%c0_34, %c0_35] : memref<18x128xf32, #tpu.memory_space<vmem>>, vector<16x128xf32>
    %36 = arith.truncf %35 : vector<16x128xf32> to vector<16x128xbf16>
    %c0_36 = arith.constant 0 : index
    %c0_37 = arith.constant 0 : index
    %c0_38 = arith.constant 0 : index
    %37 = vector.load %arg3[%c0_36, %c0_37, %c0_38] : memref<3x128x128xbf16, #tpu.memory_space<vmem>>, vector<1x128x128xbf16>
    %38 = vector.shape_cast %37 : vector<1x128x128xbf16> to vector<128x128xbf16>
    %cst_39 = arith.constant dense<0.000000e+00> : vector<16x128xf32>
    %39 = tpu.matmul %36, %38, %cst_39 {dimension_numbers = #tpu.dot_dimension_numbers<[1], [0], [0], [1], [0, 0, 1, 1], [], []>} : vector<16x128xbf16>, vector<128x128xbf16>, vector<16x128xf32> -> vector<16x128xf32>
    %40 = arith.addf %34, %39 : vector<16x128xf32>
    %c1_40 = arith.constant 1 : index
    %c0_41 = arith.constant 0 : index
    %41 = vector.load %arg7[%c1_40, %c0_41] : memref<18x128xf32, #tpu.memory_space<vmem>>, vector<16x128xf32>
    %42 = arith.truncf %41 : vector<16x128xf32> to vector<16x128xbf16>
    %c1_42 = arith.constant 1 : index
    %c0_43 = arith.constant 0 : index
    %c0_44 = arith.constant 0 : index
    %43 = vector.load %arg3[%c1_42, %c0_43, %c0_44] : memref<3x128x128xbf16, #tpu.memory_space<vmem>>, vector<1x128x128xbf16>
    %44 = vector.shape_cast %43 : vector<1x128x128xbf16> to vector<128x128xbf16>
    %cst_45 = arith.constant dense<0.000000e+00> : vector<16x128xf32>
    %45 = tpu.matmul %42, %44, %cst_45 {dimension_numbers = #tpu.dot_dimension_numbers<[1], [0], [0], [1], [0, 0, 1, 1], [], []>} : vector<16x128xbf16>, vector<128x128xbf16>, vector<16x128xf32> -> vector<16x128xf32>
    %46 = arith.addf %40, %45 : vector<16x128xf32>
    %c2_46 = arith.constant 2 : index
    %c0_47 = arith.constant 0 : index
    %47 = vector.load %arg7[%c2_46, %c0_47] : memref<18x128xf32, #tpu.memory_space<vmem>>, vector<16x128xf32>
    %48 = arith.truncf %47 : vector<16x128xf32> to vector<16x128xbf16>
    %c2_48 = arith.constant 2 : index
    %c0_49 = arith.constant 0 : index
    %c0_50 = arith.constant 0 : index
    %49 = vector.load %arg3[%c2_48, %c0_49, %c0_50] : memref<3x128x128xbf16, #tpu.memory_space<vmem>>, vector<1x128x128xbf16>
    %50 = vector.shape_cast %49 : vector<1x128x128xbf16> to vector<128x128xbf16>
    %cst_51 = arith.constant dense<0.000000e+00> : vector<16x128xf32>
    %51 = tpu.matmul %48, %50, %cst_51 {dimension_numbers = #tpu.dot_dimension_numbers<[1], [0], [0], [1], [0, 0, 1, 1], [], []>} : vector<16x128xbf16>, vector<128x128xbf16>, vector<16x128xf32> -> vector<16x128xf32>
    %52 = arith.addf %46, %51 : vector<16x128xf32>
    %53 = vector.broadcast %4 : vector<1x128xf32> to vector<16x128xf32>
    %54 = arith.addf %52, %53 : vector<16x128xf32>
    %cst_52 = arith.constant 0.000000e+00 : f32
    %55 = vector.broadcast %cst_52 : f32 to vector<16x128xf32>
    %56 = arith.maximumf %54, %55 : vector<16x128xf32>
    %c0_53 = arith.constant 0 : index
    %c0_54 = arith.constant 0 : index
    %c0_55 = arith.constant 0 : index
    %57 = vector.load %arg6[%c0_53, %c0_54, %c0_55] : memref<1x16x128xf32, #tpu.memory_space<vmem>>, vector<1x16x128xf32>
    %58 = vector.shape_cast %57 : vector<1x16x128xf32> to vector<16x128xf32>
    %59 = vector.shape_cast %56 : vector<16x128xf32> to vector<1x16x128xf32>
    tpu.vector_store %arg6[%c0_53, %c0_54, %c0_55], %59 {strides = array<i32>} : memref<1x16x128xf32, #tpu.memory_space<vmem>>, vector<1x16x128xf32>,
    return
  }
  func.func @transform_0(%arg0: i32) -> (i32, i32, i32) {
    %c0_i32 = arith.constant 0 : i32
    %c0_i32_0 = arith.constant 0 : i32
    %c0_i32_1 = arith.constant 0 : i32
    return %arg0, %c0_i32, %c0_i32_0 : i32, i32, i32
  }
  func.func @transform_1(%arg0: i32) -> (i32, i32, i32) {
    %c0_i32 = arith.constant 0 : i32
    %c0_i32_0 = arith.constant 0 : i32
    %c0_i32_1 = arith.constant 0 : i32
    %c0_i32_2 = arith.constant 0 : i32
    return %c0_i32, %c0_i32_0, %c0_i32_1 : i32, i32, i32
  }
  func.func @transform_2(%arg0: i32) -> (i32, i32, i32) {
    %c0_i32 = arith.constant 0 : i32
    %c0_i32_0 = arith.constant 0 : i32
    %c0_i32_1 = arith.constant 0 : i32
    %c0_i32_2 = arith.constant 0 : i32
    return %c0_i32, %c0_i32_0, %c0_i32_1 : i32, i32, i32
  }
  func.func @transform_3(%arg0: i32) -> (i32, i32) {
    %c0_i32 = arith.constant 0 : i32
    %c0_i32_0 = arith.constant 0 : i32
    %c0_i32_1 = arith.constant 0 : i32
    return %c0_i32, %c0_i32_0 : i32, i32
  }
  func.func @transform_4(%arg0: i32) -> (i32, i32) {
    %c0_i32 = arith.constant 0 : i32
    %c0_i32_0 = arith.constant 0 : i32
    %c0_i32_1 = arith.constant 0 : i32
    return %c0_i32, %c0_i32_0 : i32, i32
  }
  func.func @transform_5(%arg0: i32) -> (i32, i32, i32) {
    %c0_i32 = arith.constant 0 : i32
    %c0_i32_0 = arith.constant 0 : i32
    %c0_i32_1 = arith.constant 0 : i32
    return %arg0, %c0_i32, %c0_i32_0 : i32, i32, i32
  }
}

</mosaic_0001>

<llo_original>
// kernel: tpu_custom_call.1
$region0: #{tpu_custom_call.1}
  #allocation0 [shape = 'u32[]', space=smem, size = 0x4, offset = 0x4, fixed_abs, tag = 'smem constant byte address 0x4 - core index']
  #allocation1 [shape = 'u32[144,128]{1,0:T(1,128)}', space=vmem, size = 0x12000, scoped, tag = 'internal scratch']
  #allocation2 [shape = 'f32[18,128]{1,0:T(8,128)}', space=vmem, size = 0x3000, scoped, tag = 'scratch operand']
  %s0 = inlined_call_operand.vmem [shape: f32[2,18,72], index: 0, kind: input, shape index: {}]
  %s1 = inlined_call_operand.hbm [shape: bf16[3,72,128], index: 1, kind: input, shape index: {}]
  %s2 = inlined_call_operand.hbm [shape: bf16[3,128,128], index: 2, kind: input, shape index: {}]
  %s3 = inlined_call_operand.vmem [shape: bf16[72,128], index: 3, kind: input, shape index: {}]
  %s4 = inlined_call_operand.vmem [shape: f32[2,128], index: 4, kind: input, shape index: {}]
  %s5 = inlined_call_operand.hbm [shape: f32[2,16,128], index: 5, kind: output, shape index: {}]
  %s6 = sld [smem:[#allocation0]]
  $region61: #{tpu_custom_call.1} parent=0
    _
  %s8 = ssub.s32 1, %s6
  %s9 = scalar_select 0, %s8, %s6
  $region1: #{tpu_custom_call.1} parent=0
    #allocation3 [shape = 'u8[55296]{0}', space=vmem, size = 0xd800, scoped, tag = 'input window, operand 1, single buffered']
    #allocation4 [shape = 's32[2]{0}', space=sflag, size = 0x8, scoped, tag = 'scoped memory for tpu_custom_call.1']
    #allocation5 [shape = 's32[2]{0}', space=sflag, size = 0x8, scoped, tag = 'scoped memory for tpu_custom_call.1']
    #allocation6 [shape = 'u8[98304]{0}', space=vmem, size = 0x18000, scoped, tag = 'input window, operand 2, single buffered']
    #allocation7 [shape = 's32[1]{0}', space=sflag, size = 0x4, scoped, tag = 'scoped memory for tpu_custom_call.1']
    #allocation8 [shape = 'u8[16384]{0}', space=vmem, size = 0x4000, scoped, tag = 'output window, operand 0']
    %10 = vsyncpa [#allocation4], 0
    %11 = vsyncpa [#allocation7], 0
    %12 = vsyncpa [#allocation5], 0
    %s13 = scalar_lea.sflag [#allocation5], 1
    %14 = vsyncpa %s13, 0
    loop: start=0, step=1, limit=4
    $region2: #{tpu_custom_call.1} parent=1 // loop_pre_header
      _
    $region3: #{tpu_custom_call.1} parent=1 // loop_header
      %s16 = sphi 0, %s20
      %p17 = scmp.ge.s32.totalorder %s16, 4
      %s26 = sphi 0, %s28
      %s29 = sphi 0, %s26
      %s30 = sphi 0, %s29
      %s46 = sphi 0, %s30
      %s50 = sphi 0, %s50
      %s52 = sphi 0, %s50
      %s53 = sphi 0, %s52
      %s67 = sphi 0, %s53
      %s71 = sphi 0, %s71
      %s73 = sphi 0, %s71
      %s74 = sphi 0, %s73
      %s88 = sphi 0, %s74
      %s92 = sphi 0, %s92
      %s94 = sphi 0, %s92
      %s95 = sphi 0, %s94
      %s109 = sphi 0, %s95
      %s113 = sphi 0, %s113
      %s115 = sphi 0, %s113
      %s116 = sphi 0, %s115
      %s130 = sphi 0, %s116
      %s136 = sphi 0, %s138
      %s139 = sphi 0, %s136
      %s140 = sphi 0, %s139
      %s156 = sphi 0, %s140
    $region4: #{tpu_custom_call.1} parent=1 // loop_header_branch
      %19 = sbr.rel (%p17) target = $region8
    $region5: #{tpu_custom_call.1} parent=1 // loop_body
      %s21 = ssub.s32 %s16, 1
      %s22 = ssub.s32 %s16, 2
      %s23 = sadd.s32 %s16, 1
      %s24 = ssub.s32 %s16, %s23
      %p25 = scmp.eq.s32.totalorder %s24, 0
      %s27 = sadd.s32 %s26, 1
      %s28 = scalar_select %p25, %s26, %s27
      %p31 = pneg %p25
      %p32 = scmp.eq.s32.totalorder %s16, 1
      %p33 = por %p31, %p32
      %p34 = scmp.ne.s32.totalorder %s26, %s29
      %p35 = scmp.eq.s32.totalorder %s16, 0
      %p36 = por %p34, %p35
      %p37 = scmp.ne.s32.totalorder %s26, %s29
      %p38 = scmp.eq.s32.totalorder %s21, 1
      %p39 = por %p37, %p38
      %p40 = scmp.ne.s32.totalorder %s29, %s30
      %p41 = scmp.eq.s32.totalorder %s21, 0
      %p42 = por %p40, %p41
      %p43 = scmp.ne.s32.totalorder %s29, %s30
      %p44 = scmp.eq.s32.totalorder %s22, 1
      %p45 = por %p43, %p44
      %p47 = scmp.ne.s32.totalorder %s30, %s46
      %p48 = scmp.eq.s32.totalorder %s22, 0
      %p49 = por %p47, %p48
      %s51 = sadd.s32 %s50, 1
      %p54 = scmp.eq.s32.totalorder %s16, 1
      %p55 = scmp.ne.s32.totalorder %s50, %s52
      %p56 = scmp.eq.s32.totalorder %s16, 0
      %p57 = por %p55, %p56
      %p58 = scmp.ne.s32.totalorder %s50, %s52
      %p59 = scmp.eq.s32.totalorder %s21, 1
      %p60 = por %p58, %p59
      %p61 = scmp.ne.s32.totalorder %s52, %s53
      %p62 = scmp.eq.s32.totalorder %s21, 0
      %p63 = por %p61, %p62
      %p64 = scmp.ne.s32.totalorder %s52, %s53
      %p65 = scmp.eq.s32.totalorder %s22, 1
      %p66 = por %p64, %p65
      %p68 = scmp.ne.s32.totalorder %s53, %s67
      %p69 = scmp.eq.s32.totalorder %s22, 0
      %p70 = por %p68, %p69
      %s72 = sadd.s32 %s71, 1
      %p75 = scmp.eq.s32.totalorder %s16, 1
      %p76 = scmp.ne.s32.totalorder %s71, %s73
      %p77 = scmp.eq.s32.totalorder %s16, 0
      %p78 = por %p76, %p77
      %p79 = scmp.ne.s32.totalorder %s71, %s73
      %p80 = scmp.eq.s32.totalorder %s21, 1
      %p81 = por %p79, %p80
      %p82 = scmp.ne.s32.totalorder %s73, %s74
      %p83 = scmp.eq.s32.totalorder %s21, 0
      %p84 = por %p82, %p83
      %p85 = scmp.ne.s32.totalorder %s73, %s74
      %p86 = scmp.eq.s32.totalorder %s22, 1
      %p87 = por %p85, %p86
      %p89 = scmp.ne.s32.totalorder %s74, %s88
      %p90 = scmp.eq.s32.totalorder %s22, 0
      %p91 = por %p89, %p90
      %s93 = sadd.s32 %s92, 1
      %p96 = scmp.eq.s32.totalorder %s16, 1
      %p97 = scmp.ne.s32.totalorder %s92, %s94
      %p98 = scmp.eq.s32.totalorder %s16, 0
      %p99 = por %p97, %p98
      %p100 = scmp.ne.s32.totalorder %s92, %s94
      %p101 = scmp.eq.s32.totalorder %s21, 1
      %p102 = por %p100, %p101
      %p103 = scmp.ne.s32.totalorder %s94, %s95
      %p104 = scmp.eq.s32.totalorder %s21, 0
      %p105 = por %p103, %p104
      %p106 = scmp.ne.s32.totalorder %s94, %s95
      %p107 = scmp.eq.s32.totalorder %s22, 1
      %p108 = por %p106, %p107
      %p110 = scmp.ne.s32.totalorder %s95, %s109
      %p111 = scmp.eq.s32.totalorder %s22, 0
      %p112 = por %p110, %p111
      %s114 = sadd.s32 %s113, 1
      %p117 = scmp.eq.s32.totalorder %s16, 1
      %p118 = scmp.ne.s32.totalorder %s113, %s115
      %p119 = scmp.eq.s32.totalorder %s16, 0
      %p120 = por %p118, %p119
      %p121 = scmp.ne.s32.totalorder %s113, %s115
      %p122 = scmp.eq.s32.totalorder %s21, 1
      %p123 = por %p121, %p122
      %p124 = scmp.ne.s32.totalorder %s115, %s116
      %p125 = scmp.eq.s32.totalorder %s21, 0
      %p126 = por %p124, %p125
      %p127 = scmp.ne.s32.totalorder %s115, %s116
      %p128 = scmp.eq.s32.totalorder %s22, 1
      %p129 = por %p127, %p128
      %p131 = scmp.ne.s32.totalorder %s116, %s130
      %p132 = scmp.eq.s32.totalorder %s22, 0
      %p133 = por %p131, %p132
      %s134 = ssub.s32 %s16, %s23
      %p135 = scmp.eq.s32.totalorder %s134, 0
      %s137 = sadd.s32 %s136, 1
      %s138 = scalar_select %p135, %s136, %s137
      %p141 = pneg %p135
      %p142 = scmp.eq.s32.totalorder %s16, 1
      %p143 = por %p141, %p142
      %p144 = scmp.ne.s32.totalorder %s136, %s139
      %p145 = scmp.eq.s32.totalorder %s16, 0
      %p146 = por %p144, %p145
      %p147 = scmp.ne.s32.totalorder %s136, %s139
      %p148 = scmp.eq.s32.totalorder %s21, 1
      %p149 = por %p147, %p148
      %p150 = scmp.ne.s32.totalorder %s139, %s140
      %p151 = scmp.eq.s32.totalorder %s21, 0
      %p152 = por %p150, %p151
      %p153 = scmp.ne.s32.totalorder %s139, %s140
      %p154 = scmp.eq.s32.totalorder %s22, 1
      %p155 = por %p153, %p154
      %p157 = scmp.ne.s32.totalorder %s140, %s156
      %p158 = scmp.eq.s32.totalorder %s22, 0
      %p159 = por %p157, %p158
      %p160 = scmp.le.s32.totalorder 1, %s16
      %p161 = scmp.lt.s32.totalorder %s16, 3
      %p162 = pnand %p160, %p161
      %p163 = pneg %p162
      // Predicated region
      $region9: #{tpu_custom_call.1} parent=5 // pred_check
        _
      $region10: #{tpu_custom_call.1} parent=5 // pred_check_branch
        %165 = sbr.rel (%p162) target = $region12
      $region11: #{tpu_custom_call.1} parent=5 // pred_region
        %s166 = ssub.s32 %s16, 1
        // Predicated region
        $region13: #{tpu_custom_call.1} parent=11 // pred_check
          %p167 = pneg %p63
        $region14: #{tpu_custom_call.1} parent=11 // pred_check_branch
          %169 = sbr.rel (%p167) target = $region16
        $region15: #{tpu_custom_call.1} parent=11 // pred_region
          %s171 = ssub.s32 1728, 1728
          %172 = vsyncadd [#allocation4], %s171
          %s173 = sshll.u32 [#allocation3], 4
          %s174 = int_to_ptr.vmem [resolvable:$true] %s173
          %179 = dma.hbm_to_vmem [thread:$0]  %s1, 1728, %s174, [#allocation4], 64, 64, 4
        $region16: #{tpu_custom_call.1} parent=11 // pred_fallthru
          _
        // Predicated region
        $region17: #{tpu_custom_call.1} parent=11 // pred_check
          %p180 = pneg %p84
        $region18: #{tpu_custom_call.1} parent=11 // pred_check_branch
          %182 = sbr.rel (%p180) target = $region20
        $region19: #{tpu_custom_call.1} parent=11 // pred_region
          %s184 = ssub.s32 3072, 3072
          %185 = vsyncadd [#allocation7], %s184
          %s186 = sshll.u32 [#allocation6], 4
          %s187 = int_to_ptr.vmem [resolvable:$true] %s186
          %192 = dma.hbm_to_vmem [thread:$0]  %s2, 3072, %s187, [#allocation7], 64, 64, 4
        $region20: #{tpu_custom_call.1} parent=11 // pred_fallthru
          _
        // Predicated region
        $region21: #{tpu_custom_call.1} parent=11 // pred_check
          %p193 = pneg %p105
        $region22: #{tpu_custom_call.1} parent=11 // pred_check_branch
          %195 = sbr.rel (%p193) target = $region24
        $region23: #{tpu_custom_call.1} parent=11 // pred_region
          _
        $region24: #{tpu_custom_call.1} parent=11 // pred_fallthru
          _
        // Predicated region
        $region25: #{tpu_custom_call.1} parent=11 // pred_check
          %p196 = pneg %p126
        $region26: #{tpu_custom_call.1} parent=11 // pred_check_branch
          %198 = sbr.rel (%p196) target = $region28
        $region27: #{tpu_custom_call.1} parent=11 // pred_region
          _
        $region28: #{tpu_custom_call.1} parent=11 // pred_fallthru
          _
      $region12: #{tpu_custom_call.1} parent=5 // pred_fallthru
        _
      %p199 = scmp.lt.s32.totalorder %s16, 2
      // Predicated region
      $region29: #{tpu_custom_call.1} parent=5 // pred_check
        %p200 = pneg %p199
      $region30: #{tpu_custom_call.1} parent=5 // pred_check_branch
        %202 = sbr.rel (%p200) target = $region32
      $region31: #{tpu_custom_call.1} parent=5 // pred_region
        // Predicated region
        $region33: #{tpu_custom_call.1} parent=31 // pred_check
          %p203 = pneg %p36
        $region34: #{tpu_custom_call.1} parent=31 // pred_check_branch
          %205 = sbr.rel (%p203) target = $region36
        $region35: #{tpu_custom_call.1} parent=31 // pred_region
          %p206 = scmp.lt.s32.totalorder %s16, 1
          %s207 = scalar_select %p206, %s16, 1
          %s208 = smul.addr %s207, 3
          %s209 = smul.addr %s208, 8
          %s210 = scalar_lea.vmem %s0, %s209
        $region36: #{tpu_custom_call.1} parent=31 // pred_fallthru
          _
      $region32: #{tpu_custom_call.1} parent=5 // pred_fallthru
        _
      %p211 = scmp.le.s32.totalorder 1, %s16
      %p212 = scmp.lt.s32.totalorder %s16, 3
      %p213 = pnand %p211, %p212
      %p214 = pneg %p213
      // Predicated region
      $region37: #{tpu_custom_call.1} parent=5 // pred_check
        _
      $region38: #{tpu_custom_call.1} parent=5 // pred_check_branch
        %216 = sbr.rel (%p213) target = $region40
      $region39: #{tpu_custom_call.1} parent=5 // pred_region
        %s217 = ssub.s32 %s16, 1
        // Predicated region
        $region41: #{tpu_custom_call.1} parent=39 // pred_check
          %p218 = pneg %p63
        $region42: #{tpu_custom_call.1} parent=39 // pred_check_branch
          %220 = sbr.rel (%p218) target = $region44
        $region43: #{tpu_custom_call.1} parent=39 // pred_region
          %221 = dma.done [#allocation4], 1728
        $region44: #{tpu_custom_call.1} parent=39 // pred_fallthru
          _
        // Predicated region
        $region45: #{tpu_custom_call.1} parent=39 // pred_check
          %p222 = pneg %p84
        $region46: #{tpu_custom_call.1} parent=39 // pred_check_branch
          %224 = sbr.rel (%p222) target = $region48
        $region47: #{tpu_custom_call.1} parent=39 // pred_region
          %225 = dma.done [#allocation7], 3072
        $region48: #{tpu_custom_call.1} parent=39 // pred_fallthru
          _
        %p226 = scmp.lt.s32.totalorder %s21, 1
        %s227 = scalar_select %p226, %s21, 1
        %s228 = smul.addr %s227, 3
        %s229 = smul.addr %s228, 8
        %s230 = scalar_lea.vmem %s0, %s229
        %p231 = pneg %p42
        %p232 = pneg %p39
        %p233 = pneg %p63
        %p234 = pneg %p60
        %p235 = pneg %p84
        %p236 = pneg %p81
        %p237 = pneg %p105
        %p238 = pneg %p102
        %p239 = pneg %p126
        %p240 = pneg %p123
        %p241 = pneg %p152
        %p242 = pneg %p149
        %s243 = sand.u32 %s139, 1
        %s244 = scalar_lea.sflag [#allocation5], %s243
        %s245 = sand.u32 %s139, 1
        %s246 = smul.addr %s245, 16
        %s247 = scalar_lea.vmem [#allocation8], %s246
        %p248 = scmp.lt.s32.totalorder %s21, 1
        %s249 = scalar_select %p248, %s21, 1
        %s250 = smul.addr %s249, 3
        %s251 = smul.addr %s250, 8
        %s252 = scalar_lea.vmem %s0, %s251
        %254 = vst [vmem:[#allocation2] sm:$0x1] 0.0
        %255 = vst [vmem:[#allocation2 + $0x11] sm:$0x1] 0.0
        %v256 = vld [vmem:[%s4] sm:$0x1]
        %v257 = vld [vmem:[%s4 + $0x1] sm:$0x1]
        %v258 = vld [vmem:[%s252] sm:$0xff]
        %v259 = vld [vmem:[%s252 + $0x8] sm:$0xff]
        %v260 = vpack.c.bf16 %v259, %v258
        %v261 = vld [vmem:[#allocation3] sm:$0xf]
        %v262 = vld [vmem:[#allocation3 + $0x4] sm:$0xf]
        %v263 = vld [vmem:[#allocation3 + $0x8] sm:$0xf]
        %v264 = vld [vmem:[#allocation3 + $0xc] sm:$0xf]
        %v265 = vld [vmem:[#allocation3 + $0x10] sm:$0xf]
        %v266 = vld [vmem:[#allocation3 + $0x14] sm:$0xf]
        %v267 = vld [vmem:[#allocation3 + $0x18] sm:$0xf]
        %v268 = vld [vmem:[#allocation3 + $0x1c] sm:$0xf]
        %v269 = vld [vmem:[#allocation3 + $0x20] sm:$0xf]
        %v270 = vld [vmem:[%s252 + $0x1] sm:$0xff]
        %v271 = vld [vmem:[%s252 + $0x9] sm:$0xff]
        %v272 = vpack.c.bf16 %v271, %v270
        %s273 = scalar_lea.vmem [#allocation3], 36
        %v274 = vld [vmem:[%s273] sm:$0xf]
        %v275 = vld [vmem:[%s273 + $0x4] sm:$0xf]
        %v276 = vld [vmem:[%s273 + $0x8] sm:$0xf]
        %v277 = vld [vmem:[%s273 + $0xc] sm:$0xf]
        %v278 = vld [vmem:[%s273 + $0x10] sm:$0xf]
        %v279 = vld [vmem:[%s273 + $0x14] sm:$0xf]
        %v280 = vld [vmem:[%s273 + $0x18] sm:$0xf]
        %v281 = vld [vmem:[%s273 + $0x1c] sm:$0xf]
        %v282 = vld [vmem:[%s273 + $0x20] sm:$0xf]
        %v292 = vunpack.c.l.b16 %v274
        %v293 = vunpack.c.l.b16 %v275
        %v294 = vunpack.c.l.b16 %v276
        %v295 = vunpack.c.l.b16 %v277
        %v296 = vunpack.c.l.b16 %v278
        %v297 = vunpack.c.l.b16 %v279
        %v298 = vunpack.c.l.b16 %v280
        %v299 = vunpack.c.l.b16 %v281
        %v300 = vunpack.c.l.b16 %v282
        %v301 = vpack.c.b16 %v293, %v292
        %v302 = vpack.c.b16 %v295, %v294
        %v303 = vpack.c.b16 %v297, %v296
        %v304 = vpack.c.b16 %v299, %v298
        %v305 = vpack.c.b16 %v300, %v300
        %vm310 = vcmask 588800
        %v312 = vsel %vm310, %v272, 0
        %vm314 = vcmask 1043456
        %v316 = vsel %vm314, %v305, 0
        %318 = vmatprep.subr.bf16.mxu0 0
        %319 = vmatpush1.bf16.msra.mxu0 %v301
        %320 = vmatprep.subr.bf16.mxu0 0
        %321 = vmatpush1.bf16.msra.mxu0 %v302
        %322 = vmatprep.subr.bf16.mxu0 0
        %323 = vmatpush1.bf16.msra.mxu0 %v303
        %324 = vmatprep.subr.bf16.mxu0 0
        %325 = vmatpush1.bf16.msra.mxu0 %v304
        %326 = vmatprep.subr.bf16.mxu0 0
        %327 = vmatpush1.bf16.msra.mxu0 %v316
        %328 = vmatprep.subr.bf16.mxu0 0
        %329 = vmatpush1.bf16.msra.mxu0 0
        %330 = vmatprep.subr.bf16.mxu0 0
        %331 = vmatpush1.bf16.msra.mxu0 0
        %332 = vmatprep.subr.bf16.mxu0 0
        %333 = vmatpush1.bf16.msra.mxu0 0
        %334 = vmatprep.subr.bf16.mxu0 0
        %335 = vmatpush1.bf16.msra.mxu0 0
        %336 = vmatprep.subr.bf16.mxu0 0
        %337 = vmatpush1.bf16.msra.mxu0 0
        %338 = vmatprep.subr.bf16.mxu0 0
        %339 = vmatpush1.bf16.msra.mxu0 0
        %340 = vmatprep.subr.bf16.mxu0 0
        %341 = vmatpush1.bf16.msra.mxu0 0
        %342 = vmatprep.subr.bf16.mxu0 0
        %343 = vmatpush1.bf16.msra.mxu0 0
        %344 = vmatprep.subr.bf16.mxu0 0
        %345 = vmatpush1.bf16.msra.mxu0 0
        %346 = vmatprep.subr.bf16.mxu0 0
        %347 = vmatpush1.bf16.msra.mxu0 0
        %348 = vmatprep.subr.bf16.mxu0 0
        %349 = vmatpush1.bf16.msra.mxu0 0
        %350 = vmatprep.mubr.bf16.mxu0 0
        %351 = vmatmul.mubr.bf16.gmra.mrb[0].mxu0 %v312
        %v352 = vpop.f32.mrb[0].mxu0
        %v353 = vadd.f32 0.0, %v352
        %v354 = vpop.f32.mrb[0].mxu0
        %v355 = vpop.f32.mrb[0].mxu0
        %v356 = vadd.f32 0.0, %v355
        %v357 = vpop.f32.mrb[0].mxu0
        %358 = vdwg.mxu0
        %v368 = vunpack.c.l.b16 %v261
        %v369 = vunpack.c.l.b16 %v262
        %v370 = vunpack.c.l.b16 %v263
        %v371 = vunpack.c.l.b16 %v264
        %v372 = vunpack.c.l.b16 %v265
        %v373 = vunpack.c.l.b16 %v266
        %v374 = vunpack.c.l.b16 %v267
        %v375 = vunpack.c.l.b16 %v268
        %v376 = vunpack.c.l.b16 %v269
        %v377 = vpack.c.b16 %v369, %v368
        %v378 = vpack.c.b16 %v371, %v370
        %v379 = vpack.c.b16 %v373, %v372
        %v380 = vpack.c.b16 %v375, %v374
        %v381 = vpack.c.b16 %v376, %v376
        %v387 = vsel %vm310, %v260, 0
        %v390 = vsel %vm314, %v381, 0
        %392 = vmatprep.subr.bf16.mxu0 0
        %393 = vmatpush1.bf16.msra.mxu0 %v377
        %394 = vmatprep.subr.bf16.mxu0 0
        %395 = vmatpush1.bf16.msra.mxu0 %v378
        %396 = vmatprep.subr.bf16.mxu0 0
        %397 = vmatpush1.bf16.msra.mxu0 %v379
        %398 = vmatprep.subr.bf16.mxu0 0
        %399 = vmatpush1.bf16.msra.mxu0 %v380
        %400 = vmatprep.subr.bf16.mxu0 0
        %401 = vmatpush1.bf16.msra.mxu0 %v390
        %402 = vmatprep.subr.bf16.mxu0 0
        %403 = vmatpush1.bf16.msra.mxu0 0
        %404 = vmatprep.subr.bf16.mxu0 0
        %405 = vmatpush1.bf16.msra.mxu0 0
        %406 = vmatprep.subr.bf16.mxu0 0
        %407 = vmatpush1.bf16.msra.mxu0 0
        %408 = vmatprep.subr.bf16.mxu0 0
        %409 = vmatpush1.bf16.msra.mxu0 0
        %410 = vmatprep.subr.bf16.mxu0 0
        %411 = vmatpush1.bf16.msra.mxu0 0
        %412 = vmatprep.subr.bf16.mxu0 0
        %413 = vmatpush1.bf16.msra.mxu0 0
        %414 = vmatprep.subr.bf16.mxu0 0
        %415 = vmatpush1.bf16.msra.mxu0 0
        %416 = vmatprep.subr.bf16.mxu0 0
        %417 = vmatpush1.bf16.msra.mxu0 0
        %418 = vmatprep.subr.bf16.mxu0 0
        %419 = vmatpush1.bf16.msra.mxu0 0
        %420 = vmatprep.subr.bf16.mxu0 0
        %421 = vmatpush1.bf16.msra.mxu0 0
        %422 = vmatprep.subr.bf16.mxu0 0
        %423 = vmatpush1.bf16.msra.mxu0 0
        %424 = vmatprep.mubr.bf16.mxu0 0
        %425 = vmatmul.mubr.bf16.gmra.mrb[0].mxu0 %v387
        %v426 = vpop.f32.mrb[0].mxu0
        %v427 = vadd.f32 %v353, %v426
        %v428 = vpop.f32.mrb[0].mxu0
        %v429 = vpop.f32.mrb[0].mxu0
        %v430 = vadd.f32 %v356, %v429
        %v431 = vpop.f32.mrb[0].mxu0
        %432 = vdwg.mxu0
        %v433 = vld [vmem:[%s252 + $0x2] sm:$0xff]
        %v434 = vld [vmem:[%s252 + $0xa] sm:$0xff]
        %v435 = vpack.c.bf16 %v434, %v433
        %s436 = scalar_lea.vmem [#allocation3], 72
        %v437 = vld [vmem:[%s436] sm:$0xf]
        %v438 = vld [vmem:[%s436 + $0x4] sm:$0xf]
        %v439 = vld [vmem:[%s436 + $0x8] sm:$0xf]
        %v440 = vld [vmem:[%s436 + $0xc] sm:$0xf]
        %v441 = vld [vmem:[%s436 + $0x10] sm:$0xf]
        %v442 = vld [vmem:[%s436 + $0x14] sm:$0xf]
        %v443 = vld [vmem:[%s436 + $0x18] sm:$0xf]
        %v444 = vld [vmem:[%s436 + $0x1c] sm:$0xf]
        %v445 = vld [vmem:[%s436 + $0x20] sm:$0xf]
        %v455 = vunpack.c.l.b16 %v437
        %v456 = vunpack.c.l.b16 %v438
        %v457 = vunpack.c.l.b16 %v439
        %v458 = vunpack.c.l.b16 %v440
        %v459 = vunpack.c.l.b16 %v441
        %v460 = vunpack.c.l.b16 %v442
        %v461 = vunpack.c.l.b16 %v443
        %v462 = vunpack.c.l.b16 %v444
        %v463 = vunpack.c.l.b16 %v445
        %v464 = vpack.c.b16 %v456, %v455
        %v465 = vpack.c.b16 %v458, %v457
        %v466 = vpack.c.b16 %v460, %v459
        %v467 = vpack.c.b16 %v462, %v461
        %v468 = vpack.c.b16 %v463, %v463
        %v474 = vsel %vm310, %v435, 0
        %v477 = vsel %vm314, %v468, 0
        %479 = vmatprep.subr.bf16.mxu0 0
        %480 = vmatpush1.bf16.msra.mxu0 %v464
        %481 = vmatprep.subr.bf16.mxu0 0
        %482 = vmatpush1.bf16.msra.mxu0 %v465
        %483 = vmatprep.subr.bf16.mxu0 0
        %484 = vmatpush1.bf16.msra.mxu0 %v466
        %485 = vmatprep.subr.bf16.mxu0 0
        %486 = vmatpush1.bf16.msra.mxu0 %v467
        %487 = vmatprep.subr.bf16.mxu0 0
        %488 = vmatpush1.bf16.msra.mxu0 %v477
        %489 = vmatprep.subr.bf16.mxu0 0
        %490 = vmatpush1.bf16.msra.mxu0 0
        %491 = vmatprep.subr.bf16.mxu0 0
        %492 = vmatpush1.bf16.msra.mxu0 0
        %493 = vmatprep.subr.bf16.mxu0 0
        %494 = vmatpush1.bf16.msra.mxu0 0
        %495 = vmatprep.subr.bf16.mxu0 0
        %496 = vmatpush1.bf16.msra.mxu0 0
        %497 = vmatprep.subr.bf16.mxu0 0
        %498 = vmatpush1.bf16.msra.mxu0 0
        %499 = vmatprep.subr.bf16.mxu0 0
        %500 = vmatpush1.bf16.msra.mxu0 0
        %501 = vmatprep.subr.bf16.mxu0 0
        %502 = vmatpush1.bf16.msra.mxu0 0
        %503 = vmatprep.subr.bf16.mxu0 0
        %504 = vmatpush1.bf16.msra.mxu0 0
        %505 = vmatprep.subr.bf16.mxu0 0
        %506 = vmatpush1.bf16.msra.mxu0 0
        %507 = vmatprep.subr.bf16.mxu0 0
        %508 = vmatpush1.bf16.msra.mxu0 0
        %509 = vmatprep.subr.bf16.mxu0 0
        %510 = vmatpush1.bf16.msra.mxu0 0
        %511 = vmatprep.mubr.bf16.mxu0 0
        %512 = vmatmul.mubr.bf16.gmra.mrb[0].mxu0 %v474
        %v513 = vpop.f32.mrb[0].mxu0
        %v514 = vadd.f32 0.0, %v513
        %v515 = vpop.f32.mrb[0].mxu0
        %v516 = vpop.f32.mrb[0].mxu0
        %v517 = vadd.f32 0.0, %v516
        %v518 = vpop.f32.mrb[0].mxu0
        %519 = vdwg.mxu0
        %v520 = vadd.f32 %v427, %v514
        %v521 = vadd.f32 %v430, %v517
        %v522 = vlaneseq
        %v523 = vshrl.u32 %v522, 7
        %v524 = vsub.s32 0, %v523
        %v525 = vrot.slane %v256, %v524
        %v526 = vadd.f32 %v520, %v525
        %v527 = vadd.f32 %v521, %v525
        %v528 = vmax.f32 %v526, 0.0
        %v529 = vmax.f32 %v527, 0.0
        %530 = vst [vmem:[#allocation2 + $0x1] sm:$0xff] %v528
        %531 = vst [vmem:[#allocation2 + $0x9] sm:$0xff] %v529
        %v532 = vld [vmem:[%s252 + $0x1] sm:$0xff]
        %v533 = vld [vmem:[%s252 + $0x9] sm:$0xff]
        %v534 = vpack.c.bf16 %v533, %v532
        %v535 = vld [vmem:[%s3] sm:$0xf]
        %v536 = vld [vmem:[%s3 + $0x4] sm:$0xf]
        %v537 = vld [vmem:[%s3 + $0x8] sm:$0xf]
        %v538 = vld [vmem:[%s3 + $0xc] sm:$0xf]
        %v539 = vld [vmem:[%s3 + $0x10] sm:$0xf]
        %v540 = vld [vmem:[%s3 + $0x14] sm:$0xf]
        %v541 = vld [vmem:[%s3 + $0x18] sm:$0xf]
        %v542 = vld [vmem:[%s3 + $0x1c] sm:$0xf]
        %v543 = vld [vmem:[%s3 + $0x20] sm:$0xf]
        %v544 = vld [vmem:[#allocation2] sm:$0xff]
        %v545 = vld [vmem:[#allocation2 + $0x8] sm:$0xff]
        %v546 = vpack.c.bf16 %v545, %v544
        %v547 = vld [vmem:[#allocation6] sm:$0xf]
        %v548 = vld [vmem:[#allocation6 + $0x4] sm:$0xf]
        %v549 = vld [vmem:[#allocation6 + $0x8] sm:$0xf]
        %v550 = vld [vmem:[#allocation6 + $0xc] sm:$0xf]
        %v551 = vld [vmem:[#allocation6 + $0x10] sm:$0xf]
        %v552 = vld [vmem:[#allocation6 + $0x14] sm:$0xf]
        %v553 = vld [vmem:[#allocation6 + $0x18] sm:$0xf]
        %v554 = vld [vmem:[#allocation6 + $0x1c] sm:$0xf]
        %v555 = vld [vmem:[#allocation6 + $0x20] sm:$0xf]
        %v556 = vld [vmem:[#allocation6 + $0x24] sm:$0xf]
        %v557 = vld [vmem:[#allocation6 + $0x28] sm:$0xf]
        %v558 = vld [vmem:[#allocation6 + $0x2c] sm:$0xf]
        %v559 = vld [vmem:[#allocation6 + $0x30] sm:$0xf]
        %v560 = vld [vmem:[#allocation6 + $0x34] sm:$0xf]
        %v561 = vld [vmem:[#allocation6 + $0x38] sm:$0xf]
        %v562 = vld [vmem:[#allocation6 + $0x3c] sm:$0xf]
        %v579 = vunpack.c.l.b16 %v547
        %v580 = vunpack.c.l.b16 %v548
        %v581 = vunpack.c.l.b16 %v549
        %v582 = vunpack.c.l.b16 %v550
        %v583 = vunpack.c.l.b16 %v551
        %v584 = vunpack.c.l.b16 %v552
        %v585 = vunpack.c.l.b16 %v553
        %v586 = vunpack.c.l.b16 %v554
        %v587 = vunpack.c.l.b16 %v555
        %v588 = vunpack.c.l.b16 %v556
        %v589 = vunpack.c.l.b16 %v557
        %v590 = vunpack.c.l.b16 %v558
        %v591 = vunpack.c.l.b16 %v559
        %v592 = vunpack.c.l.b16 %v560
        %v593 = vunpack.c.l.b16 %v561
        %v594 = vunpack.c.l.b16 %v562
        %v595 = vpack.c.b16 %v580, %v579
        %v596 = vpack.c.b16 %v582, %v581
        %v597 = vpack.c.b16 %v584, %v583
        %v598 = vpack.c.b16 %v586, %v585
        %v599 = vpack.c.b16 %v588, %v587
        %v600 = vpack.c.b16 %v590, %v589
        %v601 = vpack.c.b16 %v592, %v591
        %v602 = vpack.c.b16 %v594, %v593
        %611 = vmatprep.subr.bf16.mxu0 0
        %612 = vmatpush1.bf16.msra.mxu0 %v595
        %613 = vmatprep.subr.bf16.mxu0 0
        %614 = vmatpush1.bf16.msra.mxu0 %v596
        %615 = vmatprep.subr.bf16.mxu0 0
        %616 = vmatpush1.bf16.msra.mxu0 %v597
        %617 = vmatprep.subr.bf16.mxu0 0
        %618 = vmatpush1.bf16.msra.mxu0 %v598
        %619 = vmatprep.subr.bf16.mxu0 0
        %620 = vmatpush1.bf16.msra.mxu0 %v599
        %621 = vmatprep.subr.bf16.mxu0 0
        %622 = vmatpush1.bf16.msra.mxu0 %v600
        %623 = vmatprep.subr.bf16.mxu0 0
        %624 = vmatpush1.bf16.msra.mxu0 %v601
        %625 = vmatprep.subr.bf16.mxu0 0
        %626 = vmatpush1.bf16.msra.mxu0 %v602
        %627 = vmatprep.subr.bf16.mxu0 0
        %628 = vmatpush1.bf16.msra.mxu0 0
        %629 = vmatprep.subr.bf16.mxu0 0
        %630 = vmatpush1.bf16.msra.mxu0 0
        %631 = vmatprep.subr.bf16.mxu0 0
        %632 = vmatpush1.bf16.msra.mxu0 0
        %633 = vmatprep.subr.bf16.mxu0 0
        %634 = vmatpush1.bf16.msra.mxu0 0
        %635 = vmatprep.subr.bf16.mxu0 0
        %636 = vmatpush1.bf16.msra.mxu0 0
        %637 = vmatprep.subr.bf16.mxu0 0
        %638 = vmatpush1.bf16.msra.mxu0 0
        %639 = vmatprep.subr.bf16.mxu0 0
        %640 = vmatpush1.bf16.msra.mxu0 0
        %641 = vmatprep.subr.bf16.mxu0 0
        %642 = vmatpush1.bf16.msra.mxu0 0
        %643 = vmatprep.mubr.bf16.mxu0 0
        %644 = vmatmul.mubr.bf16.gmra.mrb[0].mxu0 %v546
        %v645 = vpop.f32.mrb[0].mxu0
        %v646 = vadd.f32 0.0, %v645
        %v647 = vpop.f32.mrb[0].mxu0
        %v648 = vpop.f32.mrb[0].mxu0
        %v649 = vadd.f32 0.0, %v648
        %v650 = vpop.f32.mrb[0].mxu0
        %651 = vdwg.mxu0
        %v661 = vunpack.c.l.b16 %v535
        %v662 = vunpack.c.l.b16 %v536
        %v663 = vunpack.c.l.b16 %v537
        %v664 = vunpack.c.l.b16 %v538
        %v665 = vunpack.c.l.b16 %v539
        %v666 = vunpack.c.l.b16 %v540
        %v667 = vunpack.c.l.b16 %v541
        %v668 = vunpack.c.l.b16 %v542
        %v669 = vunpack.c.l.b16 %v543
        %v670 = vpack.c.b16 %v662, %v661
        %v671 = vpack.c.b16 %v664, %v663
        %v672 = vpack.c.b16 %v666, %v665
        %v673 = vpack.c.b16 %v668, %v667
        %v674 = vpack.c.b16 %v669, %v669
        %v680 = vsel %vm310, %v534, 0
        %v683 = vsel %vm314, %v674, 0
        %685 = vmatprep.subr.bf16.mxu0 0
        %686 = vmatpush1.bf16.msra.mxu0 %v670
        %687 = vmatprep.subr.bf16.mxu0 0
        %688 = vmatpush1.bf16.msra.mxu0 %v671
        %689 = vmatprep.subr.bf16.mxu0 0
        %690 = vmatpush1.bf16.msra.mxu0 %v672
        %691 = vmatprep.subr.bf16.mxu0 0
        %692 = vmatpush1.bf16.msra.mxu0 %v673
        %693 = vmatprep.subr.bf16.mxu0 0
        %694 = vmatpush1.bf16.msra.mxu0 %v683
        %695 = vmatprep.subr.bf16.mxu0 0
        %696 = vmatpush1.bf16.msra.mxu0 0
        %697 = vmatprep.subr.bf16.mxu0 0
        %698 = vmatpush1.bf16.msra.mxu0 0
        %699 = vmatprep.subr.bf16.mxu0 0
        %700 = vmatpush1.bf16.msra.mxu0 0
        %701 = vmatprep.subr.bf16.mxu0 0
        %702 = vmatpush1.bf16.msra.mxu0 0
        %703 = vmatprep.subr.bf16.mxu0 0
        %704 = vmatpush1.bf16.msra.mxu0 0
        %705 = vmatprep.subr.bf16.mxu0 0
        %706 = vmatpush1.bf16.msra.mxu0 0
        %707 = vmatprep.subr.bf16.mxu0 0
        %708 = vmatpush1.bf16.msra.mxu0 0
        %709 = vmatprep.subr.bf16.mxu0 0
        %710 = vmatpush1.bf16.msra.mxu0 0
        %711 = vmatprep.subr.bf16.mxu0 0
        %712 = vmatpush1.bf16.msra.mxu0 0
        %713 = vmatprep.subr.bf16.mxu0 0
        %714 = vmatpush1.bf16.msra.mxu0 0
        %715 = vmatprep.subr.bf16.mxu0 0
        %716 = vmatpush1.bf16.msra.mxu0 0
        %717 = vmatprep.mubr.bf16.mxu0 0
        %718 = vmatmul.mubr.bf16.gmra.mrb[0].mxu0 %v680
        %v719 = vpop.f32.mrb[0].mxu0
        %v720 = vadd.f32 %v646, %v719
        %v721 = vpop.f32.mrb[0].mxu0
        %v722 = vpop.f32.mrb[0].mxu0
        %v723 = vadd.f32 %v649, %v722
        %v724 = vpop.f32.mrb[0].mxu0
        %725 = vdwg.mxu0
        %v726 = vld [vmem:[#allocation2 + $0x1] sm:$0xff]
        %v727 = vld [vmem:[#allocation2 + $0x9] sm:$0xff]
        %v728 = vpack.c.bf16 %v727, %v726
        %s729 = scalar_lea.vmem [#allocation6], 64
        %v730 = vld [vmem:[%s729] sm:$0xf]
        %v731 = vld [vmem:[%s729 + $0x4] sm:$0xf]
        %v732 = vld [vmem:[%s729 + $0x8] sm:$0xf]
        %v733 = vld [vmem:[%s729 + $0xc] sm:$0xf]
        %v734 = vld [vmem:[%s729 + $0x10] sm:$0xf]
        %v735 = vld [vmem:[%s729 + $0x14] sm:$0xf]
        %v736 = vld [vmem:[%s729 + $0x18] sm:$0xf]
        %v737 = vld [vmem:[%s729 + $0x1c] sm:$0xf]
        %v738 = vld [vmem:[%s729 + $0x20] sm:$0xf]
        %v739 = vld [vmem:[%s729 + $0x24] sm:$0xf]
        %v740 = vld [vmem:[%s729 + $0x28] sm:$0xf]
        %v741 = vld [vmem:[%s729 + $0x2c] sm:$0xf]
        %v742 = vld [vmem:[%s729 + $0x30] sm:$0xf]
        %v743 = vld [vmem:[%s729 + $0x34] sm:$0xf]
        %v744 = vld [vmem:[%s729 + $0x38] sm:$0xf]
        %v745 = vld [vmem:[%s729 + $0x3c] sm:$0xf]
        %v762 = vunpack.c.l.b16 %v730
        %v763 = vunpack.c.l.b16 %v731
        %v764 = vunpack.c.l.b16 %v732
        %v765 = vunpack.c.l.b16 %v733
        %v766 = vunpack.c.l.b16 %v734
        %v767 = vunpack.c.l.b16 %v735
        %v768 = vunpack.c.l.b16 %v736
        %v769 = vunpack.c.l.b16 %v737
        %v770 = vunpack.c.l.b16 %v738
        %v771 = vunpack.c.l.b16 %v739
        %v772 = vunpack.c.l.b16 %v740
        %v773 = vunpack.c.l.b16 %v741
        %v774 = vunpack.c.l.b16 %v742
        %v775 = vunpack.c.l.b16 %v743
        %v776 = vunpack.c.l.b16 %v744
        %v777 = vunpack.c.l.b16 %v745
        %v778 = vpack.c.b16 %v763, %v762
        %v779 = vpack.c.b16 %v765, %v764
        %v780 = vpack.c.b16 %v767, %v766
        %v781 = vpack.c.b16 %v769, %v768
        %v782 = vpack.c.b16 %v771, %v770
        %v783 = vpack.c.b16 %v773, %v772
        %v784 = vpack.c.b16 %v775, %v774
        %v785 = vpack.c.b16 %v777, %v776
        %794 = vmatprep.subr.bf16.mxu0 0
        %795 = vmatpush1.bf16.msra.mxu0 %v778
        %796 = vmatprep.subr.bf16.mxu0 0
        %797 = vmatpush1.bf16.msra.mxu0 %v779
        %798 = vmatprep.subr.bf16.mxu0 0
        %799 = vmatpush1.bf16.msra.mxu0 %v780
        %800 = vmatprep.subr.bf16.mxu0 0
        %801 = vmatpush1.bf16.msra.mxu0 %v781
        %802 = vmatprep.subr.bf16.mxu0 0
        %803 = vmatpush1.bf16.msra.mxu0 %v782
        %804 = vmatprep.subr.bf16.mxu0 0
        %805 = vmatpush1.bf16.msra.mxu0 %v783
        %806 = vmatprep.subr.bf16.mxu0 0
        %807 = vmatpush1.bf16.msra.mxu0 %v784
        %808 = vmatprep.subr.bf16.mxu0 0
        %809 = vmatpush1.bf16.msra.mxu0 %v785
        %810 = vmatprep.subr.bf16.mxu0 0
        %811 = vmatpush1.bf16.msra.mxu0 0
        %812 = vmatprep.subr.bf16.mxu0 0
        %813 = vmatpush1.bf16.msra.mxu0 0
        %814 = vmatprep.subr.bf16.mxu0 0
        %815 = vmatpush1.bf16.msra.mxu0 0
        %816 = vmatprep.subr.bf16.mxu0 0
        %817 = vmatpush1.bf16.msra.mxu0 0
        %818 = vmatprep.subr.bf16.mxu0 0
        %819 = vmatpush1.bf16.msra.mxu0 0
        %820 = vmatprep.subr.bf16.mxu0 0
        %821 = vmatpush1.bf16.msra.mxu0 0
        %822 = vmatprep.subr.bf16.mxu0 0
        %823 = vmatpush1.bf16.msra.mxu0 0
        %824 = vmatprep.subr.bf16.mxu0 0
        %825 = vmatpush1.bf16.msra.mxu0 0
        %826 = vmatprep.mubr.bf16.mxu0 0
        %827 = vmatmul.mubr.bf16.gmra.mrb[0].mxu0 %v728
        %v828 = vpop.f32.mrb[0].mxu0
        %v829 = vadd.f32 0.0, %v828
        %v830 = vpop.f32.mrb[0].mxu0
        %v831 = vpop.f32.mrb[0].mxu0
        %v832 = vadd.f32 0.0, %v831
        %v833 = vpop.f32.mrb[0].mxu0
        %834 = vdwg.mxu0
        %v835 = vadd.f32 %v720, %v829
        %v836 = vadd.f32 %v723, %v832
        %v837 = vld [vmem:[#allocation2 + $0x2] sm:$0xff]
        %v838 = vld [vmem:[#allocation2 + $0xa] sm:$0xff]
        %v839 = vpack.c.bf16 %v838, %v837
        %s840 = scalar_lea.vmem [#allocation6], 128
        %v841 = vld [vmem:[%s840] sm:$0xf]
        %v842 = vld [vmem:[%s840 + $0x4] sm:$0xf]
        %v843 = vld [vmem:[%s840 + $0x8] sm:$0xf]
        %v844 = vld [vmem:[%s840 + $0xc] sm:$0xf]
        %v845 = vld [vmem:[%s840 + $0x10] sm:$0xf]
        %v846 = vld [vmem:[%s840 + $0x14] sm:$0xf]
        %v847 = vld [vmem:[%s840 + $0x18] sm:$0xf]
        %v848 = vld [vmem:[%s840 + $0x1c] sm:$0xf]
        %v849 = vld [vmem:[%s840 + $0x20] sm:$0xf]
        %v850 = vld [vmem:[%s840 + $0x24] sm:$0xf]
        %v851 = vld [vmem:[%s840 + $0x28] sm:$0xf]
        %v852 = vld [vmem:[%s840 + $0x2c] sm:$0xf]
        %v853 = vld [vmem:[%s840 + $0x30] sm:$0xf]
        %v854 = vld [vmem:[%s840 + $0x34] sm:$0xf]
        %v855 = vld [vmem:[%s840 + $0x38] sm:$0xf]
        %v856 = vld [vmem:[%s840 + $0x3c] sm:$0xf]
        %v873 = vunpack.c.l.b16 %v841
        %v874 = vunpack.c.l.b16 %v842
        %v875 = vunpack.c.l.b16 %v843
        %v876 = vunpack.c.l.b16 %v844
        %v877 = vunpack.c.l.b16 %v845
        %v878 = vunpack.c.l.b16 %v846
        %v879 = vunpack.c.l.b16 %v847
        %v880 = vunpack.c.l.b16 %v848
        %v881 = vunpack.c.l.b16 %v849
        %v882 = vunpack.c.l.b16 %v850
        %v883 = vunpack.c.l.b16 %v851
        %v884 = vunpack.c.l.b16 %v852
        %v885 = vunpack.c.l.b16 %v853
        %v886 = vunpack.c.l.b16 %v854
        %v887 = vunpack.c.l.b16 %v855
        %v888 = vunpack.c.l.b16 %v856
        %v889 = vpack.c.b16 %v874, %v873
        %v890 = vpack.c.b16 %v876, %v875
        %v891 = vpack.c.b16 %v878, %v877
        %v892 = vpack.c.b16 %v880, %v879
        %v893 = vpack.c.b16 %v882, %v881
        %v894 = vpack.c.b16 %v884, %v883
        %v895 = vpack.c.b16 %v886, %v885
        %v896 = vpack.c.b16 %v888, %v887
        %905 = vmatprep.subr.bf16.mxu0 0
        %906 = vmatpush1.bf16.msra.mxu0 %v889
        %907 = vmatprep.subr.bf16.mxu0 0
        %908 = vmatpush1.bf16.msra.mxu0 %v890
        %909 = vmatprep.subr.bf16.mxu0 0
        %910 = vmatpush1.bf16.msra.mxu0 %v891
        %911 = vmatprep.subr.bf16.mxu0 0
        %912 = vmatpush1.bf16.msra.mxu0 %v892
        %913 = vmatprep.subr.bf16.mxu0 0
        %914 = vmatpush1.bf16.msra.mxu0 %v893
        %915 = vmatprep.subr.bf16.mxu0 0
        %916 = vmatpush1.bf16.msra.mxu0 %v894
        %917 = vmatprep.subr.bf16.mxu0 0
        %918 = vmatpush1.bf16.msra.mxu0 %v895
        %919 = vmatprep.subr.bf16.mxu0 0
        %920 = vmatpush1.bf16.msra.mxu0 %v896
        %921 = vmatprep.subr.bf16.mxu0 0
        %922 = vmatpush1.bf16.msra.mxu0 0
        %923 = vmatprep.subr.bf16.mxu0 0
        %924 = vmatpush1.bf16.msra.mxu0 0
        %925 = vmatprep.subr.bf16.mxu0 0
        %926 = vmatpush1.bf16.msra.mxu0 0
        %927 = vmatprep.subr.bf16.mxu0 0
        %928 = vmatpush1.bf16.msra.mxu0 0
        %929 = vmatprep.subr.bf16.mxu0 0
        %930 = vmatpush1.bf16.msra.mxu0 0
        %931 = vmatprep.subr.bf16.mxu0 0
        %932 = vmatpush1.bf16.msra.mxu0 0
        %933 = vmatprep.subr.bf16.mxu0 0
        %934 = vmatpush1.bf16.msra.mxu0 0
        %935 = vmatprep.subr.bf16.mxu0 0
        %936 = vmatpush1.bf16.msra.mxu0 0
        %937 = vmatprep.mubr.bf16.mxu0 0
        %938 = vmatmul.mubr.bf16.gmra.mrb[0].mxu0 %v839
        %v939 = vpop.f32.mrb[0].mxu0
        %v940 = vadd.f32 0.0, %v939
        %v941 = vpop.f32.mrb[0].mxu0
        %v942 = vpop.f32.mrb[0].mxu0
        %v943 = vadd.f32 0.0, %v942
        %v944 = vpop.f32.mrb[0].mxu0
        %945 = vdwg.mxu0
        %v946 = vadd.f32 %v835, %v940
        %v947 = vadd.f32 %v836, %v943
        %v948 = vlaneseq
        %v949 = vshrl.u32 %v948, 7
        %v950 = vsub.s32 0, %v949
        %v951 = vrot.slane %v257, %v950
        %v952 = vadd.f32 %v946, %v951
        %v953 = vadd.f32 %v947, %v951
        %v954 = vmax.f32 %v952, 0.0
        %v955 = vmax.f32 %v953, 0.0
        %956 = vst [vmem:[%s247] sm:$0xff] %v954
        %957 = vst [vmem:[%s247 + $0x8] sm:$0xff] %v955
        %s958 = sand.u32 %s139, 1
        %s959 = scalar_lea.sflag [#allocation5], %s958
        %s960 = sand.u32 %s139, 1
        %s961 = smul.addr %s960, 16
        %s962 = scalar_lea.vmem [#allocation8], %s961
        // Predicated region
        $region49: #{tpu_custom_call.1} parent=39 // pred_check
          %p963 = pneg %p149
        $region50: #{tpu_custom_call.1} parent=39 // pred_check_branch
          %965 = sbr.rel (%p963) target = $region52
        $region51: #{tpu_custom_call.1} parent=39 // pred_region
          %s967 = ssub.s32 256, 256
          %968 = vsyncadd %s959, %s967
          %s969 = smul.addr %s21, 2
          %s970 = smul.addr %s969, 128
          %s971 = scalar_lea.hbm %s5, %s970
          %s972 = sshll.u32 %s962, 4
          %s973 = int_to_ptr.vmem [resolvable:$true] %s972
          %978 = dma.vmem_to_hbm [thread:$0]  %s973, 256, %s971, %s959, 128, 128, 8
        $region52: #{tpu_custom_call.1} parent=39 // pred_fallthru
          _
      $region40: #{tpu_custom_call.1} parent=5 // pred_fallthru
        _
      %p979 = scmp.le.s32.totalorder 2, %s16
      // Predicated region
      $region53: #{tpu_custom_call.1} parent=5 // pred_check
        %p980 = pneg %p979
      $region54: #{tpu_custom_call.1} parent=5 // pred_check_branch
        %982 = sbr.rel (%p980) target = $region56
      $region55: #{tpu_custom_call.1} parent=5 // pred_region
        %s983 = ssub.s32 %s16, 2
        // Predicated region
        $region57: #{tpu_custom_call.1} parent=55 // pred_check
          %p984 = pneg %p155
        $region58: #{tpu_custom_call.1} parent=55 // pred_check_branch
          %986 = sbr.rel (%p984) target = $region60
        $region59: #{tpu_custom_call.1} parent=55 // pred_region
          %s987 = sand.u32 %s140, 1
          %s988 = scalar_lea.sflag [#allocation5], %s987
          %s989 = sand.u32 %s140, 1
          %s990 = smul.addr %s989, 16
          %s991 = scalar_lea.vmem [#allocation8], %s990
          %992 = dma.done %s988, 256
        $region60: #{tpu_custom_call.1} parent=55 // pred_fallthru
          _
      $region56: #{tpu_custom_call.1} parent=5 // pred_fallthru
        _
    $region6: #{tpu_custom_call.1} parent=1 // loop_footer
      %s20 = sadd.s32 1, %s16
    $region7: #{tpu_custom_call.1} parent=1 // loop_footer_branch
      %15 = sbr.rel target = $region3
    $region8: #{tpu_custom_call.1} parent=1 // loop_exit
      _
    %993 = vsyncpa [#allocation4], 1
    %s994 = scalar_lea.sflag [#allocation4], 1
    %995 = vsyncpa %s994, 1
    %996 = vsyncpa [#allocation7], 1
    %997 = vsyncpa [#allocation5], 1
    %s998 = scalar_lea.sflag [#allocation5], 1
    %999 = vsyncpa %s998, 1

</llo_original>
